<compile_context>
chip_gen: v7x
topology: tpu7x:2x2x1
jax: 0.10.0
libtpu: 0.0.40
codegen_flags: <defaults>
</compile_context>

<pallas_src>
import functools
import math

import jax
import jax.numpy as jnp
import numpy as np
from jax.experimental import pallas as pl
from jax.experimental.pallas import tpu as pltpu


def _stack_conv_kernel(in_blk_ref, enc_ref, x_ref, halo_ref, w_ref, b_ref, o_ref):
    # in_blk_ref / enc_ref : SMEM scalar-prefetch tables (used by index_maps only)
    # x_ref   : (TL, C)   f32   centre rows x[l] of this tile
    # halo_ref: (1, 2, C) f32   [x[l0-1], x[l0+TL]] (circular within the sequence)
    # w_ref   : (1, 3, C, D) bf16  this encoder's conv taps k=0,1,2
    # b_ref   : (1, 1, D) f32
    # o_ref   : (TL, D)   out_dtype
    xc = x_ref[...]                                        # (TL, C)
    left = halo_ref[0, 0:1, :]                             # (1, C) == x[l0-1]
    right = halo_ref[0, 1:2, :]                            # (1, C) == x[l0+TL]
    xm1 = jnp.concatenate([left, xc[:-1, :]], axis=0)      # rows x[l-1]
    xp1 = jnp.concatenate([xc[1:, :], right], axis=0)      # rows x[l+1]
    # Three accumulating K=C matmuls (bf16 operands, f32 accumulation).  MXU
    # has huge slack in this bandwidth-bound kernel, so the split is free and
    # avoids a lane-minor concatenate.
    acc = jnp.dot(xm1.astype(jnp.bfloat16), w_ref[0, 0],
                  preferred_element_type=jnp.float32)
    acc += jnp.dot(xc.astype(jnp.bfloat16), w_ref[0, 1],
                   preferred_element_type=jnp.float32)
    acc += jnp.dot(xp1.astype(jnp.bfloat16), w_ref[0, 2],
                   preferred_element_type=jnp.float32)
    acc += b_ref[0]                                        # (1, D) broadcasts
    o_ref[...] = acc.astype(o_ref.dtype)


def encoder_stack(x, weights, biases, *, inp_lens, row_tile=1024,
                  out_dtype=jnp.bfloat16):
    """EncoderStack.forward: slice tails -> per-encoder circular conv -> concat.

    x: [B, L, c_in] f32; weights[e]: [d_model, c_in, 3] (PyTorch Conv1d layout);
    biases[e]: [d_model].  Returns ([B, sum_e L//2**inp_lens[e], d_model], attns).
    """
    B, L, C = x.shape
    E = len(inp_lens)
    D = weights[0].shape[0]
    assert all(w.shape == (D, C, 3) for w in weights)
    assert all(b.shape == (D,) for b in biases)

    l_list = [L // (2 ** int(i)) for i in inp_lens]
    total_l = sum(l_list)

    # One row-tile size TL must evenly divide L and every per-encoder length so
    # a tile never straddles a (batch, encoder) segment of the fused output.
    g = functools.reduce(math.gcd, l_list, L)
    assert g % 8 == 0, "per-encoder sequence lengths need a multiple-of-8 gcd"
    tl = 8
    cand = 8
    while cand <= min(g, row_tile):
        if g % cand == 0:
            tl = cand
        cand += 8

    # ---- static per-tile tables; tile order == concatenated-output order ----
    in_blk, enc_idx, left_src, right_src = [], [], [], []
    for b in range(B):
        for e, le in enumerate(l_list):
            start = L - le                        # x[:, -le:, :]
            for l0 in range(0, le, tl):
                in_blk.append((b * L + start + l0) // tl)
                enc_idx.append(e)
                left_src.append(b * L + start + (l0 - 1) % le)
                right_src.append(b * L + start + (l0 + tl) % le)
    num_tiles = len(in_blk)

    x_flat = x.reshape(B * L, C)                                   # f32 view
    halo = jnp.stack([x_flat[np.asarray(left_src, dtype=np.int32)],
                      x_flat[np.asarray(right_src, dtype=np.int32)]],
                     axis=1)                                       # (T, 2, C)
    w_all = jnp.stack([jnp.transpose(w, (2, 1, 0)) for w in weights],
                      axis=0).astype(jnp.bfloat16)                 # (E, 3, C, D)
    b_all = jnp.stack(biases, axis=0)[:, None, :].astype(jnp.float32)  # (E,1,D)

    in_blk = jnp.asarray(in_blk, dtype=jnp.int32)
    enc_idx = jnp.asarray(enc_idx, dtype=jnp.int32)

    out = pl.pallas_call(
        _stack_conv_kernel,
        out_shape=jax.ShapeDtypeStruct((B * total_l, D), out_dtype),
        grid_spec=pltpu.PrefetchScalarGridSpec(
            num_scalar_prefetch=2,
            grid=(num_tiles,),
            in_specs=[
                pl.BlockSpec((tl, C), lambda t, inb, enc: (inb[t], 0)),
                pl.BlockSpec((1, 2, C), lambda t, inb, enc: (t, 0, 0)),
                pl.BlockSpec((1, 3, C, D), lambda t, inb, enc: (enc[t], 0, 0, 0)),
                pl.BlockSpec((1, 1, D), lambda t, inb, enc: (enc[t], 0, 0)),
            ],
            out_specs=pl.BlockSpec((tl, D), lambda t, inb, enc: (t, 0)),
        ),
        compiler_params=pltpu.CompilerParams(
            dimension_semantics=("parallel",),   # tiles independent -> megacore
        ),
    )(in_blk, enc_idx, x_flat, halo, w_all, b_all)

    attns = [None] * E
    return out.reshape(B, total_l, D), attns


# ----------------------------- reference ------------------------------------

def _reference(x, weights, biases, inp_lens):
    # Pure-JAX reference with the same bf16 operand quantization as the kernel.
    outs = []
    for i, w, b in zip(inp_lens, weights, biases):
        le = x.shape[1] // 2 ** int(i)
        xs = x[:, -le:, :].astype(jnp.bfloat16).astype(jnp.float32)
        wq = w.astype(jnp.bfloat16).astype(jnp.float32)          # (D, C, 3)
        y = (jnp.einsum("blc,dc->bld", jnp.roll(xs, 1, axis=1), wq[:, :, 0])
             + jnp.einsum("blc,dc->bld", xs, wq[:, :, 1])
             + jnp.einsum("blc,dc->bld", jnp.roll(xs, -1, axis=1), wq[:, :, 2]))
        outs.append(y + b[None, None, :])
    return jnp.concatenate(outs, axis=-2)


if __name__ == "__main__":
    B, L, c_in, d_model = 2, 16, 8, 128   # d_model multiple of 128 -> lane-dense
    inp_lens = (0, 1)

    key = jax.random.PRNGKey(0)
    kx, *kps = jax.random.split(key, 1 + 2 * len(inp_lens))

    # Deterministic kaiming_normal_(fan_in, leaky_relu)-style init per encoder.
    fan_in = c_in * 3
    std = float(np.sqrt(2.0 / (1.0 + 0.01 ** 2)) / np.sqrt(fan_in))
    bound = 1.0 / float(np.sqrt(fan_in))

    weights, biases = [], []
    for e in range(len(inp_lens)):
        kw, kb = kps[2 * e], kps[2 * e + 1]
        weights.append(
            jax.random.normal(kw, (d_model, c_in, 3), jnp.float32) * std)
        biases.append(
            jax.random.uniform(kb, (d_model,), jnp.float32,
                               minval=-bound, maxval=bound))
    x = jax.random.normal(kx, (B, L, c_in), jnp.float32)

    fwd = jax.jit(encoder_stack,
                  static_argnames=("inp_lens", "row_tile", "out_dtype"))
    out, attns = fwd(x, tuple(weights), tuple(biases), inp_lens=inp_lens)
    out = jax.block_until_ready(out)

    ref = _reference(x, weights, biases, inp_lens)
    expected_l = sum(L // 2 ** i for i in inp_lens)
    assert out.shape == (B, expected_l, d_model)
    np.testing.assert_allclose(np.asarray(out, dtype=np.float32),
                               np.asarray(ref, dtype=np.float32),
                               rtol=2e-2, atol=2e-2)
    print("KERNEL_OK")
</pallas_src>

<mosaic_0001>
module attributes {stable_mosaic.version = 11 : i64} {
  func.func @_stack_conv_kernel(%arg0: i32, %arg1: memref<6xi32, #tpu.memory_space<smem>>, %arg2: memref<6xi32, #tpu.memory_space<smem>>, %arg3: memref<8x8xf32, #tpu.memory_space<vmem>>, %arg4: memref<1x2x8xf32, #tpu.memory_space<vmem>>, %arg5: memref<1x3x8x128xbf16, #tpu.memory_space<vmem>>, %arg6: memref<1x1x128xf32, #tpu.memory_space<vmem>>, %arg7: memref<8x128xbf16, #tpu.memory_space<vmem>>) attributes {dimension_semantics = [#tpu.dimension_semantics<parallel>], iteration_bounds = array<i64: 6>, scalar_prefetch = 2 : i64, scratch_operands = 0 : i64, tpu.core_type = #tpu.core_type<tc>, window_params = [{transform_indices = @transform_0, window_bounds = array<i64: 8, 8>}, {transform_indices = @transform_1, window_bounds = array<i64: 1, 2, 8>}, {transform_indices = @transform_2, window_bounds = array<i64: 1, 3, 8, 128>}, {transform_indices = @transform_3, window_bounds = array<i64: 1, 1, 128>}, {transform_indices = @transform_4, window_bounds = array<i64: 8, 128>}]} {
    %c0 = arith.constant 0 : index
    %c0_0 = arith.constant 0 : index
    %0 = vector.load %arg3[%c0, %c0_0] : memref<8x8xf32, #tpu.memory_space<vmem>>, vector<8x8xf32>
    %c0_1 = arith.constant 0 : index
    %c0_2 = arith.constant 0 : index
    %c0_3 = arith.constant 0 : index
    %1 = vector.load %arg4[%c0_1, %c0_2, %c0_3] : memref<1x2x8xf32, #tpu.memory_space<vmem>>, vector<1x1x8xf32>
    %2 = vector.shape_cast %1 : vector<1x1x8xf32> to vector<1x8xf32>
    %c0_4 = arith.constant 0 : index
    %c1 = arith.constant 1 : index
    %c0_5 = arith.constant 0 : index
    %3 = vector.load %arg4[%c0_4, %c1, %c0_5] : memref<1x2x8xf32, #tpu.memory_space<vmem>>, vector<1x1x8xf32>
    %4 = vector.shape_cast %3 : vector<1x1x8xf32> to vector<1x8xf32>
    %5 = vector.extract_strided_slice %0 {offsets = [0, 0], sizes = [7, 8], strides = [1, 1]} : vector<8x8xf32> to vector<7x8xf32>
    %6 = tpu.concatenate %2, %5 in 0 : vector<1x8xf32>, vector<7x8xf32> -> vector<8x8xf32>
    %7 = vector.extract_strided_slice %0 {offsets = [1, 0], sizes = [7, 8], strides = [1, 1]} : vector<8x8xf32> to vector<7x8xf32>
    %8 = tpu.concatenate %7, %4 in 0 : vector<7x8xf32>, vector<1x8xf32> -> vector<8x8xf32>
    %9 = arith.truncf %6 : vector<8x8xf32> to vector<8x8xbf16>
    %c0_6 = arith.constant 0 : index
    %c0_7 = arith.constant 0 : index
    %c0_8 = arith.constant 0 : index
    %c0_9 = arith.constant 0 : index
    %10 = vector.load %arg5[%c0_6, %c0_7, %c0_8, %c0_9] : memref<1x3x8x128xbf16, #tpu.memory_space<vmem>>, vector<1x1x8x128xbf16>
    %11 = vector.shape_cast %10 : vector<1x1x8x128xbf16> to vector<8x128xbf16>
    %cst = arith.constant dense<0.000000e+00> : vector<8x128xf32>
    %12 = tpu.matmul %9, %11, %cst {dimension_numbers = #tpu.dot_dimension_numbers<[1], [0], [0], [1], [0, 0, 1, 1], [], []>} : vector<8x8xbf16>, vector<8x128xbf16>, vector<8x128xf32> -> vector<8x128xf32>
    %13 = arith.truncf %0 : vector<8x8xf32> to vector<8x8xbf16>
    %c0_10 = arith.constant 0 : index
    %c1_11 = arith.constant 1 : index
    %c0_12 = arith.constant 0 : index
    %c0_13 = arith.constant 0 : index
    %14 = vector.load %arg5[%c0_10, %c1_11, %c0_12, %c0_13] : memref<1x3x8x128xbf16, #tpu.memory_space<vmem>>, vector<1x1x8x128xbf16>
    %15 = vector.shape_cast %14 : vector<1x1x8x128xbf16> to vector<8x128xbf16>
    %cst_14 = arith.constant dense<0.000000e+00> : vector<8x128xf32>
    %16 = tpu.matmul %13, %15, %cst_14 {dimension_numbers = #tpu.dot_dimension_numbers<[1], [0], [0], [1], [0, 0, 1, 1], [], []>} : vector<8x8xbf16>, vector<8x128xbf16>, vector<8x128xf32> -> vector<8x128xf32>
    %17 = arith.addf %12, %16 : vector<8x128xf32>
    %18 = arith.truncf %8 : vector<8x8xf32> to vector<8x8xbf16>
    %c0_15 = arith.constant 0 : index
    %c2 = arith.constant 2 : index
    %c0_16 = arith.constant 0 : index
    %c0_17 = arith.constant 0 : index
    %19 = vector.load %arg5[%c0_15, %c2, %c0_16, %c0_17] : memref<1x3x8x128xbf16, #tpu.memory_space<vmem>>, vector<1x1x8x128xbf16>
    %20 = vector.shape_cast %19 : vector<1x1x8x128xbf16> to vector<8x128xbf16>
    %cst_18 = arith.constant dense<0.000000e+00> : vector<8x128xf32>
    %21 = tpu.matmul %18, %20, %cst_18 {dimension_numbers = #tpu.dot_dimension_numbers<[1], [0], [0], [1], [0, 0, 1, 1], [], []>} : vector<8x8xbf16>, vector<8x128xbf16>, vector<8x128xf32> -> vector<8x128xf32>
    %22 = arith.addf %17, %21 : vector<8x128xf32>
    %c0_19 = arith.constant 0 : index
    %c0_20 = arith.constant 0 : index
    %c0_21 = arith.constant 0 : index
    %23 = vector.load %arg6[%c0_19, %c0_20, %c0_21] : memref<1x1x128xf32, #tpu.memory_space<vmem>>, vector<1x1x128xf32>
    %24 = vector.shape_cast %23 : vector<1x1x128xf32> to vector<1x128xf32>
    %25 = vector.broadcast %24 : vector<1x128xf32> to vector<8x128xf32>
    %26 = arith.addf %22, %25 : vector<8x128xf32>
    %27 = arith.truncf %26 : vector<8x128xf32> to vector<8x128xbf16>
    %c0_22 = arith.constant 0 : index
    %c0_23 = arith.constant 0 : index
    %28 = vector.load %arg7[%c0_22, %c0_23] : memref<8x128xbf16, #tpu.memory_space<vmem>>, vector<8x128xbf16>
    tpu.vector_store %arg7[%c0_22, %c0_23], %27 {strides = array<i32>} : memref<8x128xbf16, #tpu.memory_space<vmem>>, vector<8x128xbf16>,
    return
  }
  func.func @transform_0(%arg0: i32, %arg1: memref<6xi32, #tpu.memory_space<smem>>, %arg2: memref<6xi32, #tpu.memory_space<smem>>) -> (i32, i32) {
    %0 = arith.index_cast %arg0 : i32 to index
    %1 = memref.load %arg1[%0] : memref<6xi32, #tpu.memory_space<smem>>
    %c0_i32 = arith.constant 0 : i32
    %c0_i32_0 = arith.constant 0 : i32
    return %1, %c0_i32 : i32, i32
  }
  func.func @transform_1(%arg0: i32, %arg1: memref<6xi32, #tpu.memory_space<smem>>, %arg2: memref<6xi32, #tpu.memory_space<smem>>) -> (i32, i32, i32) {
    %c0_i32 = arith.constant 0 : i32
    %c0_i32_0 = arith.constant 0 : i32
    %c0_i32_1 = arith.constant 0 : i32
    return %arg0, %c0_i32, %c0_i32_0 : i32, i32, i32
  }
  func.func @transform_2(%arg0: i32, %arg1: memref<6xi32, #tpu.memory_space<smem>>, %arg2: memref<6xi32, #tpu.memory_space<smem>>) -> (i32, i32, i32, i32) {
    %0 = arith.index_cast %arg0 : i32 to index
    %1 = memref.load %arg2[%0] : memref<6xi32, #tpu.memory_space<smem>>
    %c0_i32 = arith.constant 0 : i32
    %c0_i32_0 = arith.constant 0 : i32
    %c0_i32_1 = arith.constant 0 : i32
    %c0_i32_2 = arith.constant 0 : i32
    return %1, %c0_i32, %c0_i32_0, %c0_i32_1 : i32, i32, i32, i32
  }
  func.func @transform_3(%arg0: i32, %arg1: memref<6xi32, #tpu.memory_space<smem>>, %arg2: memref<6xi32, #tpu.memory_space<smem>>) -> (i32, i32, i32) {
    %0 = arith.index_cast %arg0 : i32 to index
    %1 = memref.load %arg2[%0] : memref<6xi32, #tpu.memory_space<smem>>
    %c0_i32 = arith.constant 0 : i32
    %c0_i32_0 = arith.constant 0 : i32
    %c0_i32_1 = arith.constant 0 : i32
    return %1, %c0_i32, %c0_i32_0 : i32, i32, i32
  }
  func.func @transform_4(%arg0: i32, %arg1: memref<6xi32, #tpu.memory_space<smem>>, %arg2: memref<6xi32, #tpu.memory_space<smem>>) -> (i32, i32) {
    %c0_i32 = arith.constant 0 : i32
    %c0_i32_0 = arith.constant 0 : i32
    return %arg0, %c0_i32 : i32, i32
  }
}

</mosaic_0001>

<llo_original>
// kernel: encoder_stack.1
$region0: #{encoder_stack.1}
  #allocation0 [shape = 'u32[]', space=smem, size = 0x4, offset = 0x4, fixed_abs, tag = 'smem constant byte address 0x4 - core index']
  #allocation1 [shape = 'u32[144,128]{1,0:T(1,128)}', space=vmem, size = 0x12000, scoped, tag = 'internal scratch']
  #allocation2 [shape = 's32[1]{0}', space=sflag, size = 0x4, scoped, tag = 'scoped memory for encoder_stack.1']
  #allocation3 [shape = 'u8[512]{0}', space=smem, size = 0x200, scoped, tag = 'prefetched SMEM operand 0']
  #allocation4 [shape = 'u8[512]{0}', space=smem, size = 0x200, scoped, tag = 'prefetched SMEM operand 1']
  %s0 = inlined_call_operand.vmem [shape: s32[6], index: 0, kind: input, shape index: {}]
  %s1 = inlined_call_operand.vmem [shape: s32[6], index: 1, kind: input, shape index: {}]
  %s2 = inlined_call_operand.vmem [shape: f32[32,8], index: 2, kind: input, shape index: {}]
  %s3 = inlined_call_operand.vmem [shape: f32[6,2,8], index: 3, kind: input, shape index: {}]
  %s4 = inlined_call_operand.vmem [shape: bf16[2,3,8,128], index: 4, kind: input, shape index: {}]
  %s5 = inlined_call_operand.vmem [shape: f32[2,1,128], index: 5, kind: input, shape index: {}]
  %s6 = inlined_call_operand.hbm [shape: bf16[48,128], index: 6, kind: output, shape index: {}]
  %s7 = sld [smem:[#allocation0]]
  $region49: #{encoder_stack.1} parent=0
    _
  %s9 = ssub.s32 1, %s7
  %s10 = scalar_select 0, %s9, %s7
  %s11 = sshll.u32 %s0, 4
  %s12 = int_to_ptr.vmem [resolvable:$true] %s11
  %14 = dma.vmem_to_smem %s12, 16, [#allocation3], [#allocation2]
  %s15 = sshll.u32 %s1, 4
  %s16 = int_to_ptr.vmem [resolvable:$true] %s15
  %18 = dma.vmem_to_smem %s16, 16, [#allocation4], [#allocation2]
  %19 = dma.done [#allocation2], 32
  %20 = sfence
  $region1: #{encoder_stack.1} parent=0
    #allocation5 [shape = 'u8[4096]{0}', space=vmem, size = 0x1000, scoped, tag = 'output window, operand 0']
    #allocation6 [shape = 's32[2]{0}', space=sflag, size = 0x8, scoped, tag = 'scoped memory for encoder_stack.1']
    %21 = vsyncpa [#allocation6], 0
    %s22 = scalar_lea.sflag [#allocation6], 1
    %23 = vsyncpa %s22, 0
    loop: start=0, step=1, limit=8
    $region2: #{encoder_stack.1} parent=1 // loop_pre_header
      _
    $region3: #{encoder_stack.1} parent=1 // loop_header
      %s25 = sphi 0, %s29
      %p26 = scmp.ge.s32.totalorder %s25, 8
      %s37 = sphi 0, %s39
      %s40 = sphi 0, %s37
      %s41 = sphi 0, %s40
      %s57 = sphi 0, %s41
      %s63 = sphi 0, %s65
      %s66 = sphi 0, %s63
      %s67 = sphi 0, %s66
      %s83 = sphi 0, %s67
      %s91 = sphi 0, %s93
      %s94 = sphi 0, %s91
      %s95 = sphi 0, %s94
      %s111 = sphi 0, %s95
      %s119 = sphi 0, %s121
      %s122 = sphi 0, %s119
      %s123 = sphi 0, %s122
      %s139 = sphi 0, %s123
      %s145 = sphi 0, %s147
      %s148 = sphi 0, %s145
      %s149 = sphi 0, %s148
      %s165 = sphi 0, %s149
    $region4: #{encoder_stack.1} parent=1 // loop_header_branch
      %28 = sbr.rel (%p26) target = $region8
    $region5: #{encoder_stack.1} parent=1 // loop_body
      %s30 = ssub.s32 %s25, 1
      %s31 = ssub.s32 %s25, 2
      %s32 = sadd.s32 %s25, 1
      %s33 = sld [smem:[#allocation3 + %s25]]
      %s34 = sld [smem:[#allocation3 + %s32]]
      %s35 = ssub.s32 %s33, %s34
      %p36 = scmp.eq.s32.totalorder %s35, 0
      %s38 = sadd.s32 %s37, 1
      %s39 = scalar_select %p36, %s37, %s38
      %p42 = pneg %p36
      %p43 = scmp.eq.s32.totalorder %s25, 5
      %p44 = por %p42, %p43
      %p45 = scmp.ne.s32.totalorder %s37, %s40
      %p46 = scmp.eq.s32.totalorder %s25, 0
      %p47 = por %p45, %p46
      %p48 = scmp.ne.s32.totalorder %s37, %s40
      %p49 = scmp.eq.s32.totalorder %s30, 5
      %p50 = por %p48, %p49
      %p51 = scmp.ne.s32.totalorder %s40, %s41
      %p52 = scmp.eq.s32.totalorder %s30, 0
      %p53 = por %p51, %p52
      %p54 = scmp.ne.s32.totalorder %s40, %s41
      %p55 = scmp.eq.s32.totalorder %s31, 5
      %p56 = por %p54, %p55
      %p58 = scmp.ne.s32.totalorder %s41, %s57
      %p59 = scmp.eq.s32.totalorder %s31, 0
      %p60 = por %p58, %p59
      %s61 = ssub.s32 %s25, %s32
      %p62 = scmp.eq.s32.totalorder %s61, 0
      %s64 = sadd.s32 %s63, 1
      %s65 = scalar_select %p62, %s63, %s64
      %p68 = pneg %p62
      %p69 = scmp.eq.s32.totalorder %s25, 5
      %p70 = por %p68, %p69
      %p71 = scmp.ne.s32.totalorder %s63, %s66
      %p72 = scmp.eq.s32.totalorder %s25, 0
      %p73 = por %p71, %p72
      %p74 = scmp.ne.s32.totalorder %s63, %s66
      %p75 = scmp.eq.s32.totalorder %s30, 5
      %p76 = por %p74, %p75
      %p77 = scmp.ne.s32.totalorder %s66, %s67
      %p78 = scmp.eq.s32.totalorder %s30, 0
      %p79 = por %p77, %p78
      %p80 = scmp.ne.s32.totalorder %s66, %s67
      %p81 = scmp.eq.s32.totalorder %s31, 5
      %p82 = por %p80, %p81
      %p84 = scmp.ne.s32.totalorder %s67, %s83
      %p85 = scmp.eq.s32.totalorder %s31, 0
      %p86 = por %p84, %p85
      %s87 = sld [smem:[#allocation4 + %s25]]
      %s88 = sld [smem:[#allocation4 + %s32]]
      %s89 = ssub.s32 %s87, %s88
      %p90 = scmp.eq.s32.totalorder %s89, 0
      %s92 = sadd.s32 %s91, 1
      %s93 = scalar_select %p90, %s91, %s92
      %p96 = pneg %p90
      %p97 = scmp.eq.s32.totalorder %s25, 5
      %p98 = por %p96, %p97
      %p99 = scmp.ne.s32.totalorder %s91, %s94
      %p100 = scmp.eq.s32.totalorder %s25, 0
      %p101 = por %p99, %p100
      %p102 = scmp.ne.s32.totalorder %s91, %s94
      %p103 = scmp.eq.s32.totalorder %s30, 5
      %p104 = por %p102, %p103
      %p105 = scmp.ne.s32.totalorder %s94, %s95
      %p106 = scmp.eq.s32.totalorder %s30, 0
      %p107 = por %p105, %p106
      %p108 = scmp.ne.s32.totalorder %s94, %s95
      %p109 = scmp.eq.s32.totalorder %s31, 5
      %p110 = por %p108, %p109
      %p112 = scmp.ne.s32.totalorder %s95, %s111
      %p113 = scmp.eq.s32.totalorder %s31, 0
      %p114 = por %p112, %p113
      %s115 = sld [smem:[#allocation4 + %s25]]
      %s116 = sld [smem:[#allocation4 + %s32]]
      %s117 = ssub.s32 %s115, %s116
      %p118 = scmp.eq.s32.totalorder %s117, 0
      %s120 = sadd.s32 %s119, 1
      %s121 = scalar_select %p118, %s119, %s120
      %p124 = pneg %p118
      %p125 = scmp.eq.s32.totalorder %s25, 5
      %p126 = por %p124, %p125
      %p127 = scmp.ne.s32.totalorder %s119, %s122
      %p128 = scmp.eq.s32.totalorder %s25, 0
      %p129 = por %p127, %p128
      %p130 = scmp.ne.s32.totalorder %s119, %s122
      %p131 = scmp.eq.s32.totalorder %s30, 5
      %p132 = por %p130, %p131
      %p133 = scmp.ne.s32.totalorder %s122, %s123
      %p134 = scmp.eq.s32.totalorder %s30, 0
      %p135 = por %p133, %p134
      %p136 = scmp.ne.s32.totalorder %s122, %s123
      %p137 = scmp.eq.s32.totalorder %s31, 5
      %p138 = por %p136, %p137
      %p140 = scmp.ne.s32.totalorder %s123, %s139
      %p141 = scmp.eq.s32.totalorder %s31, 0
      %p142 = por %p140, %p141
      %s143 = ssub.s32 %s25, %s32
      %p144 = scmp.eq.s32.totalorder %s143, 0
      %s146 = sadd.s32 %s145, 1
      %s147 = scalar_select %p144, %s145, %s146
      %p150 = pneg %p144
      %p151 = scmp.eq.s32.totalorder %s25, 5
      %p152 = por %p150, %p151
      %p153 = scmp.ne.s32.totalorder %s145, %s148
      %p154 = scmp.eq.s32.totalorder %s25, 0
      %p155 = por %p153, %p154
      %p156 = scmp.ne.s32.totalorder %s145, %s148
      %p157 = scmp.eq.s32.totalorder %s30, 5
      %p158 = por %p156, %p157
      %p159 = scmp.ne.s32.totalorder %s148, %s149
      %p160 = scmp.eq.s32.totalorder %s30, 0
      %p161 = por %p159, %p160
      %p162 = scmp.ne.s32.totalorder %s148, %s149
      %p163 = scmp.eq.s32.totalorder %s31, 5
      %p164 = por %p162, %p163
      %p166 = scmp.ne.s32.totalorder %s149, %s165
      %p167 = scmp.eq.s32.totalorder %s31, 0
      %p168 = por %p166, %p167
      %p169 = scmp.le.s32.totalorder 1, %s25
      %p170 = scmp.lt.s32.totalorder %s25, 7
      %p171 = pnand %p169, %p170
      %p172 = pneg %p171
      // Predicated region
      $region9: #{encoder_stack.1} parent=5 // pred_check
        _
      $region10: #{encoder_stack.1} parent=5 // pred_check_branch
        %174 = sbr.rel (%p171) target = $region12
      $region11: #{encoder_stack.1} parent=5 // pred_region
        %s175 = ssub.s32 %s25, 1
      $region12: #{encoder_stack.1} parent=5 // pred_fallthru
        _
      %p176 = scmp.lt.s32.totalorder %s25, 6
      // Predicated region
      $region13: #{encoder_stack.1} parent=5 // pred_check
        %p177 = pneg %p176
      $region14: #{encoder_stack.1} parent=5 // pred_check_branch
        %179 = sbr.rel (%p177) target = $region16
      $region15: #{encoder_stack.1} parent=5 // pred_region
        // Predicated region
        $region17: #{encoder_stack.1} parent=15 // pred_check
          %p180 = pneg %p47
        $region18: #{encoder_stack.1} parent=15 // pred_check_branch
          %182 = sbr.rel (%p180) target = $region20
        $region19: #{encoder_stack.1} parent=15 // pred_region
          %s183 = sld [smem:[#allocation3 + %s25]]
          %p184 = scmp.lt.s32.totalorder %s183, 3
          %s185 = scalar_select %p184, %s183, 3
          %s186 = smul.addr %s185, 8
          %s187 = scalar_lea.vmem %s2, %s186
          %s188 = sld [smem:[#allocation3 + %s25]]
        $region20: #{encoder_stack.1} parent=15 // pred_fallthru
          _
        // Predicated region
        $region21: #{encoder_stack.1} parent=15 // pred_check
          %p189 = pneg %p73
        $region22: #{encoder_stack.1} parent=15 // pred_check_branch
          %191 = sbr.rel (%p189) target = $region24
        $region23: #{encoder_stack.1} parent=15 // pred_region
          %p192 = scmp.lt.s32.totalorder %s25, 5
          %s193 = scalar_select %p192, %s25, 5
          %s194 = smul.addr %s193, 2
          %s195 = scalar_lea.vmem %s3, %s194
        $region24: #{encoder_stack.1} parent=15 // pred_fallthru
          _
        // Predicated region
        $region25: #{encoder_stack.1} parent=15 // pred_check
          %p196 = pneg %p101
        $region26: #{encoder_stack.1} parent=15 // pred_check_branch
          %198 = sbr.rel (%p196) target = $region28
        $region27: #{encoder_stack.1} parent=15 // pred_region
          %s199 = sld [smem:[#allocation4 + %s25]]
          %p200 = scmp.lt.s32.totalorder %s199, 1
          %s201 = scalar_select %p200, %s199, 1
          %s202 = smul.addr %s201, 3
          %s203 = smul.addr %s202, 4
          %s204 = scalar_lea.vmem %s4, %s203
          %s205 = sld [smem:[#allocation4 + %s25]]
        $region28: #{encoder_stack.1} parent=15 // pred_fallthru
          _
        // Predicated region
        $region29: #{encoder_stack.1} parent=15 // pred_check
          %p206 = pneg %p129
        $region30: #{encoder_stack.1} parent=15 // pred_check_branch
          %208 = sbr.rel (%p206) target = $region32
        $region31: #{encoder_stack.1} parent=15 // pred_region
          %s209 = sld [smem:[#allocation4 + %s25]]
          %p210 = scmp.lt.s32.totalorder %s209, 1
          %s211 = scalar_select %p210, %s209, 1
          %s212 = scalar_lea.vmem %s5, %s211
          %s213 = sld [smem:[#allocation4 + %s25]]
        $region32: #{encoder_stack.1} parent=15 // pred_fallthru
          _
      $region16: #{encoder_stack.1} parent=5 // pred_fallthru
        _
      %p214 = scmp.le.s32.totalorder 1, %s25
      %p215 = scmp.lt.s32.totalorder %s25, 7
      %p216 = pnand %p214, %p215
      %p217 = pneg %p216
      // Predicated region
      $region33: #{encoder_stack.1} parent=5 // pred_check
        _
      $region34: #{encoder_stack.1} parent=5 // pred_check_branch
        %219 = sbr.rel (%p216) target = $region36
      $region35: #{encoder_stack.1} parent=5 // pred_region
        %s220 = ssub.s32 %s25, 1
        %s221 = sld [smem:[#allocation3 + %s30]]
        %p222 = scmp.lt.s32.totalorder %s221, 3
        %s223 = scalar_select %p222, %s221, 3
        %s224 = smul.addr %s223, 8
        %s225 = scalar_lea.vmem %s2, %s224
        %p226 = pneg %p53
        %p227 = pneg %p50
        %p228 = scmp.lt.s32.totalorder %s30, 5
        %s229 = scalar_select %p228, %s30, 5
        %s230 = smul.addr %s229, 2
        %s231 = scalar_lea.vmem %s3, %s230
        %p232 = pneg %p79
        %p233 = pneg %p76
        %s234 = sld [smem:[#allocation4 + %s30]]
        %p235 = scmp.lt.s32.totalorder %s234, 1
        %s236 = scalar_select %p235, %s234, 1
        %s237 = smul.addr %s236, 3
        %s238 = smul.addr %s237, 4
        %s239 = scalar_lea.vmem %s4, %s238
        %p240 = pneg %p107
        %p241 = pneg %p104
        %s242 = sld [smem:[#allocation4 + %s30]]
        %p243 = scmp.lt.s32.totalorder %s242, 1
        %s244 = scalar_select %p243, %s242, 1
        %s245 = scalar_lea.vmem %s5, %s244
        %p246 = pneg %p135
        %p247 = pneg %p132
        %p248 = pneg %p161
        %p249 = pneg %p158
        %s250 = sand.u32 %s148, 1
        %s251 = scalar_lea.sflag [#allocation6], %s250
        %s252 = sand.u32 %s148, 1
        %s253 = smul.addr %s252, 4
        %s254 = scalar_lea.vmem [#allocation5], %s253
        %s255 = sld [smem:[#allocation3 + %s30]]
        %p256 = scmp.lt.s32.totalorder %s255, 3
        %s257 = scalar_select %p256, %s255, 3
        %s258 = smul.addr %s257, 8
        %s259 = scalar_lea.vmem %s2, %s258
        %s260 = sld [smem:[#allocation3 + %s30]]
        %p261 = scmp.lt.s32.totalorder %s30, 5
        %s262 = scalar_select %p261, %s30, 5
        %s263 = smul.addr %s262, 2
        %s264 = scalar_lea.vmem %s3, %s263
        %s265 = sld [smem:[#allocation4 + %s30]]
        %p266 = scmp.lt.s32.totalorder %s265, 1
        %s267 = scalar_select %p266, %s265, 1
        %s268 = smul.addr %s267, 3
        %s269 = smul.addr %s268, 4
        %s270 = scalar_lea.vmem %s4, %s269
        %s271 = sld [smem:[#allocation4 + %s30]]
        %s272 = sld [smem:[#allocation4 + %s30]]
        %p273 = scmp.lt.s32.totalorder %s272, 1
        %s274 = scalar_select %p273, %s272, 1
        %s275 = scalar_lea.vmem %s5, %s274
        %s276 = sld [smem:[#allocation4 + %s30]]
        %v278 = vld [vmem:[%s259] sm:$0xff]
        %v279 = vld [vmem:[%s264] sm:$0x1]
        %v280 = vld [vmem:[%s264 + $0x1] sm:$0x1]
        %v282 = vrot.slane %v278, 7
        %vm284 = vcmask 1040384
        %v285 = vsel %vm284, %v279, %v282
        %v286 = vrot.slane %v278, 1
        %v289 = vrot.slane %v280, 1
        %vm291 = vcmask 1046528
        %v292 = vsel %vm291, %v286, %v289
        %v293 = vpack.c.bf16 %v285, %v285
        %v294 = vld [vmem:[%s270] sm:$0xf]
        %v295 = vpack.c.bf16 %v278, %v278
        %s296 = scalar_lea.vmem %s270, 4
        %v297 = vld [vmem:[%s296] sm:$0xf]
        %vm298 = vcmask 64512
        %v300 = vsel %vm298, %v295, 0
        %vm302 = vcmask 1043456
        %v304 = vsel %vm302, %v297, 0
        %306 = vmatprep.subr.bf16.mxu0 0
        %307 = vmatpush1.bf16.msra.mxu0 %v304
        %308 = vmatprep.subr.bf16.mxu0 0
        %309 = vmatpush1.bf16.msra.mxu0 0
        %310 = vmatprep.subr.bf16.mxu0 0
        %311 = vmatpush1.bf16.msra.mxu0 0
        %312 = vmatprep.subr.bf16.mxu0 0
        %313 = vmatpush1.bf16.msra.mxu0 0
        %314 = vmatprep.subr.bf16.mxu0 0
        %315 = vmatpush1.bf16.msra.mxu0 0
        %316 = vmatprep.subr.bf16.mxu0 0
        %317 = vmatpush1.bf16.msra.mxu0 0
        %318 = vmatprep.subr.bf16.mxu0 0
        %319 = vmatpush1.bf16.msra.mxu0 0
        %320 = vmatprep.subr.bf16.mxu0 0
        %321 = vmatpush1.bf16.msra.mxu0 0
        %322 = vmatprep.subr.bf16.mxu0 0
        %323 = vmatpush1.bf16.msra.mxu0 0
        %324 = vmatprep.subr.bf16.mxu0 0
        %325 = vmatpush1.bf16.msra.mxu0 0
        %326 = vmatprep.subr.bf16.mxu0 0
        %327 = vmatpush1.bf16.msra.mxu0 0
        %328 = vmatprep.subr.bf16.mxu0 0
        %329 = vmatpush1.bf16.msra.mxu0 0
        %330 = vmatprep.subr.bf16.mxu0 0
        %331 = vmatpush1.bf16.msra.mxu0 0
        %332 = vmatprep.subr.bf16.mxu0 0
        %333 = vmatpush1.bf16.msra.mxu0 0
        %334 = vmatprep.subr.bf16.mxu0 0
        %335 = vmatpush1.bf16.msra.mxu0 0
        %336 = vmatprep.subr.bf16.mxu0 0
        %337 = vmatpush1.bf16.msra.mxu0 0
        %338 = vmatprep.mubr.bf16.mxu0 0
        %339 = vmatmul.mubr.bf16.gmra.mrb[0].mxu0 %v300
        %v340 = vpop.f32.mrb[0].mxu0
        %v341 = vadd.f32 0.0, %v340
        %v342 = vpop.f32.mrb[0].mxu0
        %v343 = vpop.f32.mrb[0].mxu0
        %v344 = vpop.f32.mrb[0].mxu0
        %345 = vdwg.mxu0
        %v347 = vsel %vm298, %v293, 0
        %v350 = vsel %vm302, %v294, 0
        %352 = vmatprep.subr.bf16.mxu0 0
        %353 = vmatpush1.bf16.msra.mxu0 %v350
        %354 = vmatprep.subr.bf16.mxu0 0
        %355 = vmatpush1.bf16.msra.mxu0 0
        %356 = vmatprep.subr.bf16.mxu0 0
        %357 = vmatpush1.bf16.msra.mxu0 0
        %358 = vmatprep.subr.bf16.mxu0 0
        %359 = vmatpush1.bf16.msra.mxu0 0
        %360 = vmatprep.subr.bf16.mxu0 0
        %361 = vmatpush1.bf16.msra.mxu0 0
        %362 = vmatprep.subr.bf16.mxu0 0
        %363 = vmatpush1.bf16.msra.mxu0 0
        %364 = vmatprep.subr.bf16.mxu0 0
        %365 = vmatpush1.bf16.msra.mxu0 0
        %366 = vmatprep.subr.bf16.mxu0 0
        %367 = vmatpush1.bf16.msra.mxu0 0
        %368 = vmatprep.subr.bf16.mxu0 0
        %369 = vmatpush1.bf16.msra.mxu0 0
        %370 = vmatprep.subr.bf16.mxu0 0
        %371 = vmatpush1.bf16.msra.mxu0 0
        %372 = vmatprep.subr.bf16.mxu0 0
        %373 = vmatpush1.bf16.msra.mxu0 0
        %374 = vmatprep.subr.bf16.mxu0 0
        %375 = vmatpush1.bf16.msra.mxu0 0
        %376 = vmatprep.subr.bf16.mxu0 0
        %377 = vmatpush1.bf16.msra.mxu0 0
        %378 = vmatprep.subr.bf16.mxu0 0
        %379 = vmatpush1.bf16.msra.mxu0 0
        %380 = vmatprep.subr.bf16.mxu0 0
        %381 = vmatpush1.bf16.msra.mxu0 0
        %382 = vmatprep.subr.bf16.mxu0 0
        %383 = vmatpush1.bf16.msra.mxu0 0
        %384 = vmatprep.mubr.bf16.mxu0 0
        %385 = vmatmul.mubr.bf16.gmra.mrb[0].mxu0 %v347
        %v386 = vpop.f32.mrb[0].mxu0
        %v387 = vadd.f32 %v341, %v386
        %v388 = vpop.f32.mrb[0].mxu0
        %v389 = vpop.f32.mrb[0].mxu0
        %v390 = vpop.f32.mrb[0].mxu0
        %391 = vdwg.mxu0
        %v392 = vpack.c.bf16 %v292, %v292
        %s393 = scalar_lea.vmem %s270, 8
        %v394 = vld [vmem:[%s393] sm:$0xf]
        %v396 = vsel %vm298, %v392, 0
        %v399 = vsel %vm302, %v394, 0
        %401 = vmatprep.subr.bf16.mxu0 0
        %402 = vmatpush1.bf16.msra.mxu0 %v399
        %403 = vmatprep.subr.bf16.mxu0 0
        %404 = vmatpush1.bf16.msra.mxu0 0
        %405 = vmatprep.subr.bf16.mxu0 0
        %406 = vmatpush1.bf16.msra.mxu0 0
        %407 = vmatprep.subr.bf16.mxu0 0
        %408 = vmatpush1.bf16.msra.mxu0 0
        %409 = vmatprep.subr.bf16.mxu0 0
        %410 = vmatpush1.bf16.msra.mxu0 0
        %411 = vmatprep.subr.bf16.mxu0 0
        %412 = vmatpush1.bf16.msra.mxu0 0
        %413 = vmatprep.subr.bf16.mxu0 0
        %414 = vmatpush1.bf16.msra.mxu0 0
        %415 = vmatprep.subr.bf16.mxu0 0
        %416 = vmatpush1.bf16.msra.mxu0 0
        %417 = vmatprep.subr.bf16.mxu0 0
        %418 = vmatpush1.bf16.msra.mxu0 0
        %419 = vmatprep.subr.bf16.mxu0 0
        %420 = vmatpush1.bf16.msra.mxu0 0
        %421 = vmatprep.subr.bf16.mxu0 0
        %422 = vmatpush1.bf16.msra.mxu0 0
        %423 = vmatprep.subr.bf16.mxu0 0
        %424 = vmatpush1.bf16.msra.mxu0 0
        %425 = vmatprep.subr.bf16.mxu0 0
        %426 = vmatpush1.bf16.msra.mxu0 0
        %427 = vmatprep.subr.bf16.mxu0 0
        %428 = vmatpush1.bf16.msra.mxu0 0
        %429 = vmatprep.subr.bf16.mxu0 0
        %430 = vmatpush1.bf16.msra.mxu0 0
        %431 = vmatprep.subr.bf16.mxu0 0
        %432 = vmatpush1.bf16.msra.mxu0 0
        %433 = vmatprep.mubr.bf16.mxu0 0
        %434 = vmatmul.mubr.bf16.gmra.mrb[0].mxu0 %v396
        %v435 = vpop.f32.mrb[0].mxu0
        %v436 = vadd.f32 0.0, %v435
        %v437 = vpop.f32.mrb[0].mxu0
        %v438 = vpop.f32.mrb[0].mxu0
        %v439 = vpop.f32.mrb[0].mxu0
        %440 = vdwg.mxu0
        %v441 = vadd.f32 %v387, %v436
        %v442 = vld [vmem:[%s275] sm:$0x1]
        %v444 = vlaneseq
        %v445 = vshrl.u32 %v444, 7
        %v446 = vsub.s32 0, %v445
        %v447 = vrot.slane %v442, %v446
        %v449 = vadd.f32 %v441, %v447
        %v450 = vpack.c.bf16 %v449, %v449
        %451 = vst [vmem:[%s254] sm:$0xf] %v450
        %s452 = sand.u32 %s148, 1
        %s453 = scalar_lea.sflag [#allocation6], %s452
        %s454 = sand.u32 %s148, 1
        %s455 = smul.addr %s454, 4
        %s456 = scalar_lea.vmem [#allocation5], %s455
        // Predicated region
        $region37: #{encoder_stack.1} parent=35 // pred_check
          %p457 = pneg %p158
        $region38: #{encoder_stack.1} parent=35 // pred_check_branch
          %459 = sbr.rel (%p457) target = $region40
        $region39: #{encoder_stack.1} parent=35 // pred_region
          %s461 = ssub.s32 64, 64
          %462 = vsyncadd %s453, %s461
          %s463 = smul.addr %s30, 64
          %s464 = scalar_lea.hbm %s6, %s463
          %s466 = sshll.u32 %s456, 4
          %s467 = int_to_ptr.vmem [resolvable:$true] %s466
          %469 = dma.vmem_to_hbm [thread:$0]  %s467, 64, %s464, %s453
        $region40: #{encoder_stack.1} parent=35 // pred_fallthru
          _
      $region36: #{encoder_stack.1} parent=5 // pred_fallthru
        _
      %p470 = scmp.le.s32.totalorder 2, %s25
      // Predicated region
      $region41: #{encoder_stack.1} parent=5 // pred_check
        %p471 = pneg %p470
      $region42: #{encoder_stack.1} parent=5 // pred_check_branch
        %473 = sbr.rel (%p471) target = $region44
      $region43: #{encoder_stack.1} parent=5 // pred_region
        %s474 = ssub.s32 %s25, 2
        // Predicated region
        $region45: #{encoder_stack.1} parent=43 // pred_check
          %p475 = pneg %p164
        $region46: #{encoder_stack.1} parent=43 // pred_check_branch
          %477 = sbr.rel (%p475) target = $region48
        $region47: #{encoder_stack.1} parent=43 // pred_region
          %s478 = sand.u32 %s149, 1
          %s479 = scalar_lea.sflag [#allocation6], %s478
          %s480 = sand.u32 %s149, 1
          %s481 = smul.addr %s480, 4
          %s482 = scalar_lea.vmem [#allocation5], %s481
          %483 = dma.done %s479, 64
        $region48: #{encoder_stack.1} parent=43 // pred_fallthru
          _
      $region44: #{encoder_stack.1} parent=5 // pred_fallthru
        _
    $region6: #{encoder_stack.1} parent=1 // loop_footer
      %s29 = sadd.s32 1, %s25
    $region7: #{encoder_stack.1} parent=1 // loop_footer_branch
      %24 = sbr.rel target = $region3
    $region8: #{encoder_stack.1} parent=1 // loop_exit
      _
    %484 = vsyncpa [#allocation6], 1
    %s485 = scalar_lea.sflag [#allocation6], 1
    %486 = vsyncpa %s485, 1

</llo_original>
